<compile_context>
chip_gen: v7x
topology: tpu7x:2x2x1
jax: 0.10.0
libtpu: 0.0.40
codegen_flags: <defaults>
</compile_context>

<pallas_src>
import functools

import jax
import jax.numpy as jnp
from jax.experimental import pallas as pl
from jax.experimental.pallas import tpu as pltpu


def _round_up(x, m):
    return (x + m - 1) // m * m


def _device_block_budget():
    """Returns (streaming_block_bytes, vmem_limit_bytes) by TPU generation."""
    kind = ""
    try:
        kind = jax.devices()[0].device_kind.lower()
    except Exception:
        pass
    if "v7" in kind:
        # v7x: 64 MiB VMEM / TensorCore -> keep double-buffered blocks modest.
        return 4 * 1024 * 1024, 48 * 1024 * 1024
    if any(t in kind for t in ("v6", "v5", "v4", "v3")):
        # 128 MiB physical VMEM; scoped default is small, so set it explicitly.
        return 8 * 1024 * 1024, 64 * 1024 * 1024
    # Unknown device: conservative.
    return 4 * 1024 * 1024, 32 * 1024 * 1024


# --------------- Phase 1: squeeze (global average pool over HW) ---------------

def _pool_kernel(x_ref, psum_ref, *, thw, hw):
    """Accumulate 128-lane partial sums of x into the (tr, 128) output block.

    The output block index is constant across the HW grid axis, so the output
    itself is the VMEM-resident accumulator (zeroed at j == 0, written back to
    HBM when the row-tile index changes).
    """
    j = pl.program_id(1)

    @pl.when(j == 0)
    def _():
        psum_ref[...] = jnp.zeros_like(psum_ref)

    tr = psum_ref.shape[0]
    n_chunks = thw // 128
    ragged = (hw % thw) != 0
    if ragged:
        # Global column index of each lane within chunk 0 of this block
        # (hoisted once; per-chunk masks just compare against a constant).
        col = (jax.lax.broadcasted_iota(jnp.int32, (tr, 128), 1) + j * thw)

    def chunk(k):
        v = x_ref[:, k * 128:(k + 1) * 128].astype(psum_ref.dtype)
        if ragged:
            v = jnp.where(col < hw - k * 128, v, 0.0)
        return v

    acc = chunk(0)
    for k in range(1, n_chunks):
        acc = acc + chunk(k)
    psum_ref[...] += acc


# --------------- Phase 3: scale (hot streaming loop) ---------------------------

def _scale_kernel(x_ref, s_ref, o_ref, *, tr):
    i = pl.program_id(0)
    r0 = pl.multiple_of(i * tr, tr)
    s_blk = s_ref[pl.ds(r0, tr), :]            # (tr, 1); broadcast over lanes
    o_ref[...] = x_ref[...] * s_blk


# --------------- Wrapper --------------------------------------------------------

def se_layer(x, w1, b1, w2, b2):
    """x: (B, C, H, W); returns (B, C, H, W). Weights stored as (in, out)."""
    B, C, H, W = x.shape
    rows, hw = B * C, H * W

    # Lane-dense layout: (B*C) on the sublane axis, H*W on the lane axis.
    # Pure metadata reshape: no HBM copy.
    x2 = x.reshape(rows, hw)

    block_bytes, vmem_limit = _device_block_budget()
    block_elems = block_bytes // x.dtype.itemsize

    # HW tile: lane-aligned, as wide as the budget allows at 256 rows.
    thw = min(block_elems // 256, _round_up(hw, 128))
    thw = max(128, (thw // 128) * 128)
    # Row tile for the streaming scale pass: fill the block budget.
    tr_scale = max(8, min((block_elems // thw) // 8 * 8, _round_up(rows, 8)))
    # Row tile for the pool pass: bounded register pressure for the chunked
    # accumulation, and >= 2 parallel row tiles when rows allow (v7x megacore).
    tr_pool = min(tr_scale, 256)
    if rows > 8 and pl.cdiv(rows, tr_pool) < 2:
        tr_pool = _round_up(pl.cdiv(rows, 2), 8)

    grid_pool = (pl.cdiv(rows, tr_pool), pl.cdiv(hw, thw))
    grid_scale = (pl.cdiv(rows, tr_scale), pl.cdiv(hw, thw))

    # Phase 1: lane-dense partial sums over HW -> (rows, 128), f32.
    pooled = pl.pallas_call(
        functools.partial(_pool_kernel, thw=thw, hw=hw),
        out_shape=jax.ShapeDtypeStruct((rows, 128), jnp.float32),
        grid_spec=pltpu.PrefetchScalarGridSpec(
            num_scalar_prefetch=0,
            grid=grid_pool,
            in_specs=[pl.BlockSpec((tr_pool, thw), lambda i, j: (i, j))],
            out_specs=pl.BlockSpec((tr_pool, 128), lambda i, j: (i, 0))),
        compiler_params=pltpu.CompilerParams(
            dimension_semantics=("parallel", "arbitrary"),
            vmem_limit_bytes=vmem_limit),
    )(x2)

    # Phase 2: final cross-lane reduce + excitation MLP in plain JAX.
    # The (B, C) matmuls are far below MXU tile size; a dedicated kernel was
    # pure launch overhead (per perf review).
    y = (jnp.sum(pooled, axis=-1) * (1.0 / hw)).reshape(B, C)
    h = jnp.maximum(y @ w1 + b1, 0.0)
    s = jax.nn.sigmoid(h @ w2 + b2)                                # (B, C)

    # Phase 3: streaming read-scale-write. The per-row scale is one tiny
    # untiled VMEM-resident input; pad it (rows_pad * 4 bytes, negligible) so
    # the in-kernel pl.ds slice never reads out of bounds.
    rows_pad = grid_scale[0] * tr_scale
    s_col = s.reshape(rows, 1).astype(x.dtype)
    if rows_pad != rows:
        s_col = jnp.pad(s_col, ((0, rows_pad - rows), (0, 0)))

    out = pl.pallas_call(
        functools.partial(_scale_kernel, tr=tr_scale),
        out_shape=jax.ShapeDtypeStruct((rows, hw), x.dtype),
        grid_spec=pltpu.PrefetchScalarGridSpec(
            num_scalar_prefetch=0,
            grid=grid_scale,
            in_specs=[pl.BlockSpec((tr_scale, thw), lambda i, j: (i, j)),
                      pl.BlockSpec(memory_space=pltpu.MemorySpace.VMEM)],
            out_specs=pl.BlockSpec((tr_scale, thw), lambda i, j: (i, j))),
        compiler_params=pltpu.CompilerParams(
            dimension_semantics=("parallel", "parallel"),
            vmem_limit_bytes=vmem_limit),
    )(x2, s_col)

    return out.reshape(B, C, H, W)


# --------------- Params / reference ---------------------------------------------

def init_params(key, input_channels, internal_neurons):
    """Synthetic params matching nn.Linear shapes (stored transposed: (in, out))."""
    k1, k2, k3, k4 = jax.random.split(key, 4)
    w1 = jax.random.normal(k1, (input_channels, internal_neurons), jnp.float32) * 0.1
    b1 = jax.random.normal(k2, (internal_neurons,), jnp.float32) * 0.1
    w2 = jax.random.normal(k3, (internal_neurons, input_channels), jnp.float32) * 0.1
    b2 = jax.random.normal(k4, (input_channels,), jnp.float32) * 0.1
    return w1, b1, w2, b2


def se_layer_ref(x, w1, b1, w2, b2):
    """Pure-JAX reference of the PyTorch forward."""
    y = jnp.mean(x, axis=(2, 3))                      # adaptive avg pool -> (B, C)
    y = jnp.maximum(y @ w1 + b1, 0.0)                 # Linear + ReLU
    y = jax.nn.sigmoid(y @ w2 + b2)                   # Linear + Sigmoid
    return x * y[:, :, None, None]                    # scale


if __name__ == "__main__":
    key = jax.random.PRNGKey(0)
    kx, kp = jax.random.split(key)

    B, C, H, W = 2, 4, 16, 16
    internal = 8

    x = jax.random.normal(kx, (B, C, H, W), jnp.float32)
    w1, b1, w2, b2 = init_params(kp, C, internal)

    out = se_layer(x, w1, b1, w2, b2)
    out = jax.block_until_ready(out)

    ref = se_layer_ref(x, w1, b1, w2, b2)
    assert out.shape == (B, C, H, W)
    assert jnp.allclose(out, ref, atol=1e-5, rtol=1e-5)

    print("KERNEL_OK")
</pallas_src>

<mosaic_0001>
module attributes {stable_mosaic.version = 11 : i64} {
  func.func @_pool_kernel(%arg0: i32, %arg1: i32, %arg2: memref<8x256xf32, #tpu.memory_space<vmem>>, %arg3: memref<8x128xf32, #tpu.memory_space<vmem>>) attributes {dimension_semantics = [#tpu.dimension_semantics<parallel>, #tpu.dimension_semantics<arbitrary>], iteration_bounds = array<i64: 1, 1>, scalar_prefetch = 0 : i64, scratch_operands = 0 : i64, tpu.core_type = #tpu.core_type<tc>, window_params = [{transform_indices = @transform_0, window_bounds = array<i64: 8, 256>}, {transform_indices = @transform_1, window_bounds = array<i64: 8, 128>}]} {
    %c0_i32 = arith.constant 0 : i32
    %0 = arith.cmpi eq, %arg1, %c0_i32 : i32
    %1 = arith.extui %0 : i1 to i32
    %c0_i32_0 = arith.constant 0 : i32
    %2 = arith.cmpi ne, %1, %c0_i32_0 : i32
    scf.if %2 {
      %cst = arith.constant 0.000000e+00 : f32
      %9 = vector.broadcast %cst : f32 to vector<8x128xf32>
      %c0_7 = arith.constant 0 : index
      %c0_8 = arith.constant 0 : index
      %10 = vector.load %arg3[%c0_7, %c0_8] : memref<8x128xf32, #tpu.memory_space<vmem>>, vector<8x128xf32>
      tpu.vector_store %arg3[%c0_7, %c0_8], %9 {strides = array<i32>} : memref<8x128xf32, #tpu.memory_space<vmem>>, vector<8x128xf32>,
    } else {
    }
    %c0 = arith.constant 0 : index
    %c0_1 = arith.constant 0 : index
    %3 = vector.load %arg2[%c0, %c0_1] : memref<8x256xf32, #tpu.memory_space<vmem>>, vector<8x128xf32>
    %c0_2 = arith.constant 0 : index
    %c128 = arith.constant 128 : index
    %4 = vector.load %arg2[%c0_2, %c128] : memref<8x256xf32, #tpu.memory_space<vmem>>, vector<8x128xf32>
    %5 = arith.addf %3, %4 : vector<8x128xf32>
    %c0_3 = arith.constant 0 : index
    %c0_4 = arith.constant 0 : index
    %6 = vector.load %arg3[%c0_3, %c0_4] : memref<8x128xf32, #tpu.memory_space<vmem>>, vector<8x128xf32>
    %7 = arith.addf %6, %5 : vector<8x128xf32>
    %c0_5 = arith.constant 0 : index
    %c0_6 = arith.constant 0 : index
    %8 = vector.load %arg3[%c0_5, %c0_6] : memref<8x128xf32, #tpu.memory_space<vmem>>, vector<8x128xf32>
    tpu.vector_store %arg3[%c0_5, %c0_6], %7 {strides = array<i32>} : memref<8x128xf32, #tpu.memory_space<vmem>>, vector<8x128xf32>,
    return
  }
  func.func @transform_0(%arg0: i32, %arg1: i32) -> (i32, i32) {
    %c0_i32 = arith.constant 0 : i32
    return %arg0, %arg1 : i32, i32
  }
  func.func @transform_1(%arg0: i32, %arg1: i32) -> (i32, i32) {
    %c0_i32 = arith.constant 0 : i32
    %c0_i32_0 = arith.constant 0 : i32
    return %arg0, %c0_i32 : i32, i32
  }
}

</mosaic_0001>

<llo_original>
// kernel: tpu_custom_call.1
$region0: #{tpu_custom_call.1}
  #allocation0 [shape = 'u32[]', space=smem, size = 0x4, offset = 0x4, fixed_abs, tag = 'smem constant byte address 0x4 - core index']
  #allocation1 [shape = 'u32[144,128]{1,0:T(1,128)}', space=vmem, size = 0x12000, scoped, tag = 'internal scratch']
  %s0 = inlined_call_operand.hbm [shape: f32[8,256], index: 0, kind: input, shape index: {}]
  %s1 = inlined_call_operand.hbm [shape: f32[8,128], index: 1, kind: output, shape index: {}]
  %s2 = sld [smem:[#allocation0]]
  $region22: #{tpu_custom_call.1} parent=0
    _
  %s4 = ssub.s32 1, %s2
  %s5 = scalar_select 0, %s4, %s2
  $region1: #{tpu_custom_call.1} parent=0
    #allocation2 [shape = 'u8[8192]{0}', space=vmem, size = 0x2000, scoped, tag = 'input window, operand 0, single buffered']
    #allocation3 [shape = 's32[1]{0}', space=sflag, size = 0x4, scoped, tag = 'scoped memory for tpu_custom_call.1']
    #allocation4 [shape = 's32[1]{0}', space=sflag, size = 0x4, scoped, tag = 'scoped memory for tpu_custom_call.1']
    #allocation5 [shape = 'u8[4096]{0}', space=vmem, size = 0x1000, scoped, tag = 'output window, operand 0, single buffered']
    %6 = vsyncpa [#allocation3], 0
    %7 = vsyncpa [#allocation4], 0
    // Predicated region
    $region2: #{tpu_custom_call.1} parent=1 // pred_check
      _
    $region3: #{tpu_custom_call.1} parent=1 // pred_check_branch
      %9 = sbr.rel (0) target = $region5
    $region4: #{tpu_custom_call.1} parent=1 // pred_region
      %s11 = ssub.s32 256, 256
      %12 = vsyncadd [#allocation3], %s11
      %s14 = sshll.u32 [#allocation2], 4
      %s15 = int_to_ptr.vmem [resolvable:$true] %s14
      %17 = dma.hbm_to_vmem [thread:$0]  %s0, 256, %s15, [#allocation3]
    $region5: #{tpu_custom_call.1} parent=1 // pred_fallthru
      _
    // Predicated region
    $region6: #{tpu_custom_call.1} parent=1 // pred_check
      _
    $region7: #{tpu_custom_call.1} parent=1 // pred_check_branch
      %19 = sbr.rel (0) target = $region9
    $region8: #{tpu_custom_call.1} parent=1 // pred_region
      %20 = dma.done [#allocation3], 256
    $region9: #{tpu_custom_call.1} parent=1 // pred_fallthru
      _
    %p21 = scmp.eq.s32.totalorder 0, 0
    // Predicated region
    $region10: #{tpu_custom_call.1} parent=1 // pred_check
      %p22 = pneg %p21
    $region11: #{tpu_custom_call.1} parent=1 // pred_check_branch
      %24 = sbr.rel (%p22) target = $region13
    $region12: #{tpu_custom_call.1} parent=1 // pred_region
      %25 = vst [vmem:[#allocation5] sm:$0xff] 0.0
    $region13: #{tpu_custom_call.1} parent=1 // pred_fallthru
      _
    %v26 = vld [vmem:[#allocation2] sm:$0xff]
    %v27 = vld [vmem:[#allocation2 + $0x8] sm:$0xff]
    %v28 = vadd.f32 %v26, %v27
    %v29 = vld [vmem:[#allocation5] sm:$0xff]
    %v30 = vadd.f32 %v29, %v28
    %31 = vst [vmem:[#allocation5] sm:$0xff] %v30
    // Predicated region
    $region14: #{tpu_custom_call.1} parent=1 // pred_check
      _
    $region15: #{tpu_custom_call.1} parent=1 // pred_check_branch
      %33 = sbr.rel (0) target = $region17
    $region16: #{tpu_custom_call.1} parent=1 // pred_region
      %s35 = ssub.s32 128, 128
      %36 = vsyncadd [#allocation4], %s35
      %s38 = sshll.u32 [#allocation5], 4
      %s39 = int_to_ptr.vmem [resolvable:$true] %s38
      %41 = dma.vmem_to_hbm [thread:$0]  %s39, 128, %s1, [#allocation4]
    $region17: #{tpu_custom_call.1} parent=1 // pred_fallthru
      _
    // Predicated region
    $region18: #{tpu_custom_call.1} parent=1 // pred_check
      _
    $region19: #{tpu_custom_call.1} parent=1 // pred_check_branch
      %43 = sbr.rel (0) target = $region21
    $region20: #{tpu_custom_call.1} parent=1 // pred_region
      %44 = dma.done [#allocation4], 128
    $region21: #{tpu_custom_call.1} parent=1 // pred_fallthru
      _
    %45 = vsyncpa [#allocation3], 1
    %46 = vsyncpa [#allocation4], 1

</llo_original>
